<compile_context>
chip_gen: v7x
topology: tpu7x:2x2x1
jax: 0.10.0
libtpu: 0.0.40
codegen_flags: <defaults>
</compile_context>

<pallas_src>
import jax
import jax.numpy as jnp
from jax.experimental import pallas as pl
from jax.experimental.pallas import tpu as pltpu

LANE = 128  # TPU lane width; minimum lane-dense output width.


def _round_up(n, m):
    return ((n + m - 1) // m) * m


def dqn_kernel(x_ref, w1_ref, b1_ref, w2_ref, b2_ref, o_ref):
    # fc1 (MXU, bf16 inputs, f32 accumulation) + bias + ReLU in f32 (VPU).
    h = jnp.dot(x_ref[...], w1_ref[...], preferred_element_type=jnp.float32)
    h = jnp.maximum(h + b1_ref[...], 0.0)
    # fc2 (MXU) on lane-padded weights; bias add in f32; lane-dense store.
    out = jnp.dot(h.astype(jnp.bfloat16), w2_ref[...],
                  preferred_element_type=jnp.float32)
    o_ref[...] = (out + b2_ref[...]).astype(o_ref.dtype)


def dqn_forward(x, w1, b1, w2, b2, *, tile_b=512):
    """x: [B, state_dim] f32 -> [B, action_dim] f32.

    w1: [state_dim, hidden_dim], b1: [1, hidden_dim]
    w2: [hidden_dim, action_dim], b2: [1, action_dim]
    (weights stored pre-transposed relative to torch's nn.Linear)
    """
    B, state_dim = x.shape
    hidden_dim = w1.shape[1]
    action_dim = w2.shape[1]

    # --- Pad fc2 output lane dimension to a multiple of 128 (lane-dense out).
    out_pad = max(LANE, _round_up(action_dim, LANE))
    w2p = jnp.zeros((hidden_dim, out_pad), jnp.float32).at[:, :action_dim].set(w2)
    b2p = jnp.zeros((1, out_pad), jnp.float32).at[:, :action_dim].set(b2)

    # --- bf16 for the big DMA operands; biases stay f32 (tiny, f32 VPU adds).
    xb = x.astype(jnp.bfloat16)
    w1b = w1.astype(jnp.bfloat16)
    w2b = w2p.astype(jnp.bfloat16)

    # --- Batch tiling: pad B up so the grid divides evenly; tile is a multiple
    #     of 8 sublanes. Weights/biases stay VMEM-resident across the grid.
    tile_b = min(tile_b, _round_up(B, 8))
    tile_b = _round_up(tile_b, 8)
    Bp = _round_up(B, tile_b)
    if Bp != B:
        xb = jnp.pad(xb, ((0, Bp - B), (0, 0)))
    grid = (Bp // tile_b,)

    out = pl.pallas_call(
        dqn_kernel,
        out_shape=jax.ShapeDtypeStruct((Bp, out_pad), jnp.float32),
        grid=grid,
        in_specs=[
            pl.BlockSpec((tile_b, state_dim), lambda i: (i, 0)),     # x tile
            pl.BlockSpec((state_dim, hidden_dim), lambda i: (0, 0)),  # w1 (resident)
            pl.BlockSpec((1, hidden_dim), lambda i: (0, 0)),          # b1 (resident)
            pl.BlockSpec((hidden_dim, out_pad), lambda i: (0, 0)),    # w2 (resident)
            pl.BlockSpec((1, out_pad), lambda i: (0, 0)),             # b2 (resident)
        ],
        out_specs=pl.BlockSpec((tile_b, out_pad), lambda i: (i, 0)),
        compiler_params=pltpu.CompilerParams(
            dimension_semantics=("parallel",)),
    )(xb, w1b, b1, w2b, b2p)

    return out[:B, :action_dim]


def init_params(key, state_dim=12, hidden_dim=256, action_dim=2):
    """Deterministic init mimicking nn.Linear's uniform(-1/sqrt(fan_in), ...)."""
    k1, k2, k3, k4 = jax.random.split(key, 4)
    bound1 = 1.0 / jnp.sqrt(state_dim)
    bound2 = 1.0 / jnp.sqrt(hidden_dim)
    # Stored as [in, out] (transpose of torch's [out, in]).
    w1 = jax.random.uniform(k1, (state_dim, hidden_dim), jnp.float32, -bound1, bound1)
    b1 = jax.random.uniform(k2, (1, hidden_dim), jnp.float32, -bound1, bound1)
    w2 = jax.random.uniform(k3, (hidden_dim, action_dim), jnp.float32, -bound2, bound2)
    b2 = jax.random.uniform(k4, (1, action_dim), jnp.float32, -bound2, bound2)
    return w1, b1, w2, b2


def _reference(x, w1, b1, w2, b2):
    """Pure-JAX reference matching the kernel's bf16 rounding points."""
    xb = x.astype(jnp.bfloat16).astype(jnp.float32)
    w1b = w1.astype(jnp.bfloat16).astype(jnp.float32)
    w2b = w2.astype(jnp.bfloat16).astype(jnp.float32)
    h = jnp.maximum(xb @ w1b + b1, 0.0)
    h = h.astype(jnp.bfloat16).astype(jnp.float32)
    return h @ w2b + b2


if __name__ == "__main__":
    key = jax.random.PRNGKey(0)
    k_x, k_p, k_x2 = jax.random.split(key, 3)

    state_dim, hidden_dim, action_dim = 12, 256, 2
    w1, b1, w2, b2 = init_params(k_p, state_dim, hidden_dim, action_dim)

    # Small RL-style batch (exercises the single-tile path).
    B = 8
    x = jax.random.normal(k_x, (B, state_dim), jnp.float32)
    out = jax.block_until_ready(dqn_forward(x, w1, b1, w2, b2))
    ref = _reference(x, w1, b1, w2, b2)
    assert out.shape == (B, action_dim)
    assert jnp.allclose(out, ref, atol=1e-3, rtol=1e-3)

    # Larger, non-multiple batch (exercises the batch grid + padding path).
    B2 = 1000
    x2 = jax.random.normal(k_x2, (B2, state_dim), jnp.float32)
    out2 = jax.block_until_ready(dqn_forward(x2, w1, b1, w2, b2, tile_b=256))
    ref2 = _reference(x2, w1, b1, w2, b2)
    assert out2.shape == (B2, action_dim)
    assert jnp.allclose(out2, ref2, atol=1e-3, rtol=1e-3)

    print("KERNEL_OK")
</pallas_src>

<mosaic_0001>
module attributes {stable_mosaic.version = 11 : i64} {
  func.func @dqn_kernel(%arg0: i32, %arg1: memref<8x12xbf16, #tpu.memory_space<vmem>>, %arg2: memref<12x256xbf16, #tpu.memory_space<vmem>>, %arg3: memref<1x256xf32, #tpu.memory_space<vmem>>, %arg4: memref<256x128xbf16, #tpu.memory_space<vmem>>, %arg5: memref<1x128xf32, #tpu.memory_space<vmem>>, %arg6: memref<8x128xf32, #tpu.memory_space<vmem>>) attributes {dimension_semantics = [#tpu.dimension_semantics<parallel>], iteration_bounds = array<i64: 1>, scalar_prefetch = 0 : i64, scratch_operands = 0 : i64, tpu.core_type = #tpu.core_type<tc>, window_params = [{transform_indices = @transform_0, window_bounds = array<i64: 8, 12>}, {pipeline_mode = #tpu.pipeline_mode<synchronous>, transform_indices = @transform_1, window_bounds = array<i64: 12, 256>}, {pipeline_mode = #tpu.pipeline_mode<synchronous>, transform_indices = @transform_2, window_bounds = array<i64: 1, 256>}, {pipeline_mode = #tpu.pipeline_mode<synchronous>, transform_indices = @transform_3, window_bounds = array<i64: 256, 128>}, {pipeline_mode = #tpu.pipeline_mode<synchronous>, transform_indices = @transform_4, window_bounds = array<i64: 1, 128>}, {transform_indices = @transform_5, window_bounds = array<i64: 8, 128>}]} {
    %c0 = arith.constant 0 : index
    %c0_0 = arith.constant 0 : index
    %0 = vector.load %arg1[%c0, %c0_0] : memref<8x12xbf16, #tpu.memory_space<vmem>>, vector<8x12xbf16>
    %c0_1 = arith.constant 0 : index
    %c0_2 = arith.constant 0 : index
    %1 = vector.load %arg2[%c0_1, %c0_2] : memref<12x256xbf16, #tpu.memory_space<vmem>>, vector<12x256xbf16>
    %cst = arith.constant dense<0.000000e+00> : vector<8x256xf32>
    %2 = tpu.matmul %0, %1, %cst {dimension_numbers = #tpu.dot_dimension_numbers<[1], [0], [0], [1], [0, 0, 1, 1], [], []>} : vector<8x12xbf16>, vector<12x256xbf16>, vector<8x256xf32> -> vector<8x256xf32>
    %c0_3 = arith.constant 0 : index
    %c0_4 = arith.constant 0 : index
    %3 = vector.load %arg3[%c0_3, %c0_4] : memref<1x256xf32, #tpu.memory_space<vmem>>, vector<1x256xf32>
    %4 = vector.broadcast %3 : vector<1x256xf32> to vector<8x256xf32>
    %5 = arith.addf %2, %4 : vector<8x256xf32>
    %cst_5 = arith.constant 0.000000e+00 : f32
    %6 = vector.broadcast %cst_5 : f32 to vector<8x256xf32>
    %7 = arith.maximumf %5, %6 : vector<8x256xf32>
    %8 = arith.truncf %7 : vector<8x256xf32> to vector<8x256xbf16>
    %c0_6 = arith.constant 0 : index
    %c0_7 = arith.constant 0 : index
    %9 = vector.load %arg4[%c0_6, %c0_7] : memref<256x128xbf16, #tpu.memory_space<vmem>>, vector<256x128xbf16>
    %cst_8 = arith.constant dense<0.000000e+00> : vector<8x128xf32>
    %10 = tpu.matmul %8, %9, %cst_8 {dimension_numbers = #tpu.dot_dimension_numbers<[1], [0], [0], [1], [0, 0, 1, 1], [], []>} : vector<8x256xbf16>, vector<256x128xbf16>, vector<8x128xf32> -> vector<8x128xf32>
    %c0_9 = arith.constant 0 : index
    %c0_10 = arith.constant 0 : index
    %11 = vector.load %arg5[%c0_9, %c0_10] : memref<1x128xf32, #tpu.memory_space<vmem>>, vector<1x128xf32>
    %12 = vector.broadcast %11 : vector<1x128xf32> to vector<8x128xf32>
    %13 = arith.addf %10, %12 : vector<8x128xf32>
    %c0_11 = arith.constant 0 : index
    %c0_12 = arith.constant 0 : index
    %14 = vector.load %arg6[%c0_11, %c0_12] : memref<8x128xf32, #tpu.memory_space<vmem>>, vector<8x128xf32>
    tpu.vector_store %arg6[%c0_11, %c0_12], %13 {strides = array<i32>} : memref<8x128xf32, #tpu.memory_space<vmem>>, vector<8x128xf32>,
    return
  }
  func.func @transform_0(%arg0: i32) -> (i32, i32) {
    %c0_i32 = arith.constant 0 : i32
    %c0_i32_0 = arith.constant 0 : i32
    return %arg0, %c0_i32 : i32, i32
  }
  func.func @transform_1(%arg0: i32) -> (i32, i32) {
    %c0_i32 = arith.constant 0 : i32
    %c0_i32_0 = arith.constant 0 : i32
    %c0_i32_1 = arith.constant 0 : i32
    return %c0_i32, %c0_i32_0 : i32, i32
  }
  func.func @transform_2(%arg0: i32) -> (i32, i32) {
    %c0_i32 = arith.constant 0 : i32
    %c0_i32_0 = arith.constant 0 : i32
    %c0_i32_1 = arith.constant 0 : i32
    return %c0_i32, %c0_i32_0 : i32, i32
  }
  func.func @transform_3(%arg0: i32) -> (i32, i32) {
    %c0_i32 = arith.constant 0 : i32
    %c0_i32_0 = arith.constant 0 : i32
    %c0_i32_1 = arith.constant 0 : i32
    return %c0_i32, %c0_i32_0 : i32, i32
  }
  func.func @transform_4(%arg0: i32) -> (i32, i32) {
    %c0_i32 = arith.constant 0 : i32
    %c0_i32_0 = arith.constant 0 : i32
    %c0_i32_1 = arith.constant 0 : i32
    return %c0_i32, %c0_i32_0 : i32, i32
  }
  func.func @transform_5(%arg0: i32) -> (i32, i32) {
    %c0_i32 = arith.constant 0 : i32
    %c0_i32_0 = arith.constant 0 : i32
    return %arg0, %c0_i32 : i32, i32
  }
}

</mosaic_0001>

<llo_original>
// kernel: tpu_custom_call.1
$region0: #{tpu_custom_call.1}
  #allocation0 [shape = 'u32[]', space=smem, size = 0x4, offset = 0x4, fixed_abs, tag = 'smem constant byte address 0x4 - core index']
  #allocation1 [shape = 'u32[144,128]{1,0:T(1,128)}', space=vmem, size = 0x12000, scoped, tag = 'internal scratch']
  %s0 = inlined_call_operand.hbm [shape: bf16[8,12], index: 0, kind: input, shape index: {}]
  %s1 = inlined_call_operand.hbm [shape: bf16[12,256], index: 1, kind: input, shape index: {}]
  %s2 = inlined_call_operand.vmem [shape: f32[1,256], index: 2, kind: input, shape index: {}]
  %s3 = inlined_call_operand.hbm [shape: bf16[256,128], index: 3, kind: input, shape index: {}]
  %s4 = inlined_call_operand.vmem [shape: f32[1,128], index: 4, kind: input, shape index: {}]
  %s5 = inlined_call_operand.hbm [shape: f32[8,128], index: 5, kind: output, shape index: {}]
  %s6 = sld [smem:[#allocation0]]
  $region42: #{tpu_custom_call.1} parent=0
    _
  %s8 = ssub.s32 1, %s6
  %s9 = scalar_select 0, %s8, %s6
  $region1: #{tpu_custom_call.1} parent=0
    #allocation2 [shape = 'u8[2048]{0}', space=vmem, size = 0x800, scoped, tag = 'input window, operand 0, single buffered']
    #allocation3 [shape = 's32[1]{0}', space=sflag, size = 0x4, scoped, tag = 'scoped memory for tpu_custom_call.1']
    #allocation4 [shape = 's32[1]{0}', space=sflag, size = 0x4, scoped, tag = 'scoped memory for tpu_custom_call.1']
    #allocation5 [shape = 'u8[8192]{0}', space=vmem, size = 0x2000, scoped, tag = 'input window, operand 1, single buffered']
    #allocation6 [shape = 's32[1]{0}', space=sflag, size = 0x4, scoped, tag = 'scoped memory for tpu_custom_call.1']
    #allocation7 [shape = 'u8[65536]{0}', space=vmem, size = 0x10000, scoped, tag = 'input window, operand 3, single buffered']
    #allocation8 [shape = 'u8[4096]{0}', space=vmem, size = 0x1000, scoped, tag = 'output window, operand 0, single buffered']
    %10 = vsyncpa [#allocation3], 0
    %11 = vsyncpa [#allocation6], 0
    %12 = vsyncpa [#allocation4], 0
    // Predicated region
    $region2: #{tpu_custom_call.1} parent=1 // pred_check
      _
    $region3: #{tpu_custom_call.1} parent=1 // pred_check_branch
      %14 = sbr.rel (0) target = $region5
    $region4: #{tpu_custom_call.1} parent=1 // pred_region
      %s16 = ssub.s32 64, 64
      %17 = vsyncadd [#allocation3], %s16
      %s19 = sshll.u32 [#allocation2], 4
      %s20 = int_to_ptr.vmem [resolvable:$true] %s19
      %22 = dma.hbm_to_vmem [thread:$0]  %s0, 64, %s20, [#allocation3]
    $region5: #{tpu_custom_call.1} parent=1 // pred_fallthru
      _
    // Predicated region
    $region6: #{tpu_custom_call.1} parent=1 // pred_check
      _
    $region7: #{tpu_custom_call.1} parent=1 // pred_check_branch
      %24 = sbr.rel (0) target = $region9
    $region8: #{tpu_custom_call.1} parent=1 // pred_region
      %s26 = ssub.s32 256, 256
      %27 = vsyncadd [#allocation6], %s26
      %s28 = sshll.u32 [#allocation5], 4
      %s29 = int_to_ptr.vmem [resolvable:$true] %s28
      %34 = dma.hbm_to_vmem [thread:$0]  %s1, 256, %s29, [#allocation6], 128, 128, 8
    $region9: #{tpu_custom_call.1} parent=1 // pred_fallthru
      _
    // Predicated region
    $region10: #{tpu_custom_call.1} parent=1 // pred_check
      _
    $region11: #{tpu_custom_call.1} parent=1 // pred_check_branch
      %36 = sbr.rel (0) target = $region13
    $region12: #{tpu_custom_call.1} parent=1 // pred_region
      _
    $region13: #{tpu_custom_call.1} parent=1 // pred_fallthru
      _
    // Predicated region
    $region14: #{tpu_custom_call.1} parent=1 // pred_check
      _
    $region15: #{tpu_custom_call.1} parent=1 // pred_check_branch
      %38 = sbr.rel (0) target = $region17
    $region16: #{tpu_custom_call.1} parent=1 // pred_region
      %s40 = ssub.s32 2048, 2048
      %41 = vsyncadd [#allocation6], %s40
      %s42 = sshll.u32 [#allocation7], 4
      %s43 = int_to_ptr.vmem [resolvable:$true] %s42
      %48 = dma.hbm_to_vmem [thread:$0]  %s3, 2048, %s43, [#allocation6], 64, 64, 4
    $region17: #{tpu_custom_call.1} parent=1 // pred_fallthru
      _
    // Predicated region
    $region18: #{tpu_custom_call.1} parent=1 // pred_check
      _
    $region19: #{tpu_custom_call.1} parent=1 // pred_check_branch
      %50 = sbr.rel (0) target = $region21
    $region20: #{tpu_custom_call.1} parent=1 // pred_region
      _
    $region21: #{tpu_custom_call.1} parent=1 // pred_fallthru
      _
    // Predicated region
    $region22: #{tpu_custom_call.1} parent=1 // pred_check
      _
    $region23: #{tpu_custom_call.1} parent=1 // pred_check_branch
      %52 = sbr.rel (0) target = $region25
    $region24: #{tpu_custom_call.1} parent=1 // pred_region
      %53 = dma.done [#allocation3], 64
    $region25: #{tpu_custom_call.1} parent=1 // pred_fallthru
      _
    // Predicated region
    $region26: #{tpu_custom_call.1} parent=1 // pred_check
      _
    $region27: #{tpu_custom_call.1} parent=1 // pred_check_branch
      %55 = sbr.rel (0) target = $region29
    $region28: #{tpu_custom_call.1} parent=1 // pred_region
      %56 = dma.done [#allocation6], 256
    $region29: #{tpu_custom_call.1} parent=1 // pred_fallthru
      _
    // Predicated region
    $region30: #{tpu_custom_call.1} parent=1 // pred_check
      _
    $region31: #{tpu_custom_call.1} parent=1 // pred_check_branch
      %58 = sbr.rel (0) target = $region33
    $region32: #{tpu_custom_call.1} parent=1 // pred_region
      %59 = dma.done [#allocation6], 2048
    $region33: #{tpu_custom_call.1} parent=1 // pred_fallthru
      _
    %v61 = vld [vmem:[#allocation2] sm:$0xf]
    %v62 = vld [vmem:[#allocation5] sm:$0xff]
    %v63 = vld [vmem:[#allocation5 + $0x8] sm:$0x33]
    %v64 = vld [vmem:[%s2] sm:$0x3]
    %v66 = vlaneseq
    %v67 = vshrl.u32 %v66, 7
    %v68 = vsub.s32 0, %v67
    %v69 = vrot.slane %v64, %v68
    %v70 = vlaneseq
    %v71 = vshrl.u32 %v70, 7
    %v72 = vsub.s32 1, %v71
    %v73 = vrot.slane %v64, %v72
    %v78 = vunpack.c.l.b16 %v62
    %v79 = vunpack.c.h.b16 %v62
    %v80 = vunpack.c.l.b16 %v63
    %v81 = vunpack.c.h.b16 %v63
    %v82 = vpack.c.b16 %v80, %v78
    %v83 = vpack.c.b16 %v81, %v79
    %vm84 = vcmask 97280
    %v86 = vsel %vm84, %v61, 0
    %vm88 = vcmask 1045504
    %v90 = vsel %vm88, %v82, 0
    %v93 = vsel %vm88, %v83, 0
    %95 = vmatprep.subr.bf16.mxu0 %v93
    %96 = vmatpush1.bf16.msra.mxu0 %v90
    %97 = vmatprep.subr.bf16.mxu0 0
    %98 = vmatpush1.bf16.msra.mxu0 0
    %99 = vmatprep.subr.bf16.mxu0 0
    %100 = vmatpush1.bf16.msra.mxu0 0
    %101 = vmatprep.subr.bf16.mxu0 0
    %102 = vmatpush1.bf16.msra.mxu0 0
    %103 = vmatprep.subr.bf16.mxu0 0
    %104 = vmatpush1.bf16.msra.mxu0 0
    %105 = vmatprep.subr.bf16.mxu0 0
    %106 = vmatpush1.bf16.msra.mxu0 0
    %107 = vmatprep.subr.bf16.mxu0 0
    %108 = vmatpush1.bf16.msra.mxu0 0
    %109 = vmatprep.subr.bf16.mxu0 0
    %110 = vmatpush1.bf16.msra.mxu0 0
    %111 = vmatprep.subr.bf16.mxu0 0
    %112 = vmatpush1.bf16.msra.mxu0 0
    %113 = vmatprep.subr.bf16.mxu0 0
    %114 = vmatpush1.bf16.msra.mxu0 0
    %115 = vmatprep.subr.bf16.mxu0 0
    %116 = vmatpush1.bf16.msra.mxu0 0
    %117 = vmatprep.subr.bf16.mxu0 0
    %118 = vmatpush1.bf16.msra.mxu0 0
    %119 = vmatprep.subr.bf16.mxu0 0
    %120 = vmatpush1.bf16.msra.mxu0 0
    %121 = vmatprep.subr.bf16.mxu0 0
    %122 = vmatpush1.bf16.msra.mxu0 0
    %123 = vmatprep.subr.bf16.mxu0 0
    %124 = vmatpush1.bf16.msra.mxu0 0
    %125 = vmatprep.subr.bf16.mxu0 0
    %126 = vmatpush1.bf16.msra.mxu0 0
    %127 = vmatprep.mubr.bf16.mxu0 0
    %128 = vmatmul.mubr.bf16.gmra.mrb[0].mxu0 %v86
    %v129 = vpop.f32.mrb[0].mxu0
    %v130 = vadd.f32 %v69, %v129
    %v131 = vpop.f32.mrb[0].mxu0
    %v132 = vadd.f32 %v73, %v131
    %v133 = vpop.f32.mrb[0].mxu0
    %v134 = vpop.f32.mrb[0].mxu0
    %135 = vdwg.mxu0
    %v136 = vmax.f32 %v130, 0.0
    %v137 = vmax.f32 %v132, 0.0
    %v138 = vpack.c.bf16 %v136, %v136
    %v139 = vpack.c.bf16 %v137, %v137
    %v140 = vld [vmem:[#allocation7] sm:$0xf]
    %v141 = vld [vmem:[#allocation7 + $0x4] sm:$0xf]
    %v142 = vld [vmem:[#allocation7 + $0x8] sm:$0xf]
    %v143 = vld [vmem:[#allocation7 + $0xc] sm:$0xf]
    %v144 = vld [vmem:[#allocation7 + $0x10] sm:$0xf]
    %v145 = vld [vmem:[#allocation7 + $0x14] sm:$0xf]
    %v146 = vld [vmem:[#allocation7 + $0x18] sm:$0xf]
    %v147 = vld [vmem:[#allocation7 + $0x1c] sm:$0xf]
    %v148 = vld [vmem:[#allocation7 + $0x20] sm:$0xf]
    %v149 = vld [vmem:[#allocation7 + $0x24] sm:$0xf]
    %v150 = vld [vmem:[#allocation7 + $0x28] sm:$0xf]
    %v151 = vld [vmem:[#allocation7 + $0x2c] sm:$0xf]
    %v152 = vld [vmem:[#allocation7 + $0x30] sm:$0xf]
    %v153 = vld [vmem:[#allocation7 + $0x34] sm:$0xf]
    %v154 = vld [vmem:[#allocation7 + $0x38] sm:$0xf]
    %v155 = vld [vmem:[#allocation7 + $0x3c] sm:$0xf]
    %v156 = vld [vmem:[#allocation7 + $0x40] sm:$0xf]
    %v157 = vld [vmem:[#allocation7 + $0x44] sm:$0xf]
    %v158 = vld [vmem:[#allocation7 + $0x48] sm:$0xf]
    %v159 = vld [vmem:[#allocation7 + $0x4c] sm:$0xf]
    %v160 = vld [vmem:[#allocation7 + $0x50] sm:$0xf]
    %v161 = vld [vmem:[#allocation7 + $0x54] sm:$0xf]
    %v162 = vld [vmem:[#allocation7 + $0x58] sm:$0xf]
    %v163 = vld [vmem:[#allocation7 + $0x5c] sm:$0xf]
    %v164 = vld [vmem:[#allocation7 + $0x60] sm:$0xf]
    %v165 = vld [vmem:[#allocation7 + $0x64] sm:$0xf]
    %v166 = vld [vmem:[#allocation7 + $0x68] sm:$0xf]
    %v167 = vld [vmem:[#allocation7 + $0x6c] sm:$0xf]
    %v168 = vld [vmem:[#allocation7 + $0x70] sm:$0xf]
    %v169 = vld [vmem:[#allocation7 + $0x74] sm:$0xf]
    %v170 = vld [vmem:[#allocation7 + $0x78] sm:$0xf]
    %v171 = vld [vmem:[#allocation7 + $0x7c] sm:$0xf]
    %v172 = vld [vmem:[%s4] sm:$0x1]
    %v174 = vlaneseq
    %v175 = vshrl.u32 %v174, 7
    %v176 = vsub.s32 0, %v175
    %v177 = vrot.slane %v172, %v176
    %v211 = vunpack.c.l.b16 %v140
    %v212 = vunpack.c.l.b16 %v141
    %v213 = vunpack.c.l.b16 %v142
    %v214 = vunpack.c.l.b16 %v143
    %v215 = vunpack.c.l.b16 %v144
    %v216 = vunpack.c.l.b16 %v145
    %v217 = vunpack.c.l.b16 %v146
    %v218 = vunpack.c.l.b16 %v147
    %v219 = vunpack.c.l.b16 %v148
    %v220 = vunpack.c.l.b16 %v149
    %v221 = vunpack.c.l.b16 %v150
    %v222 = vunpack.c.l.b16 %v151
    %v223 = vunpack.c.l.b16 %v152
    %v224 = vunpack.c.l.b16 %v153
    %v225 = vunpack.c.l.b16 %v154
    %v226 = vunpack.c.l.b16 %v155
    %v227 = vunpack.c.l.b16 %v156
    %v228 = vunpack.c.l.b16 %v157
    %v229 = vunpack.c.l.b16 %v158
    %v230 = vunpack.c.l.b16 %v159
    %v231 = vunpack.c.l.b16 %v160
    %v232 = vunpack.c.l.b16 %v161
    %v233 = vunpack.c.l.b16 %v162
    %v234 = vunpack.c.l.b16 %v163
    %v235 = vunpack.c.l.b16 %v164
    %v236 = vunpack.c.l.b16 %v165
    %v237 = vunpack.c.l.b16 %v166
    %v238 = vunpack.c.l.b16 %v167
    %v239 = vunpack.c.l.b16 %v168
    %v240 = vunpack.c.l.b16 %v169
    %v241 = vunpack.c.l.b16 %v170
    %v242 = vunpack.c.l.b16 %v171
    %v243 = vpack.c.b16 %v212, %v211
    %v244 = vpack.c.b16 %v214, %v213
    %v245 = vpack.c.b16 %v216, %v215
    %v246 = vpack.c.b16 %v218, %v217
    %v247 = vpack.c.b16 %v220, %v219
    %v248 = vpack.c.b16 %v222, %v221
    %v249 = vpack.c.b16 %v224, %v223
    %v250 = vpack.c.b16 %v226, %v225
    %v251 = vpack.c.b16 %v228, %v227
    %v252 = vpack.c.b16 %v230, %v229
    %v253 = vpack.c.b16 %v232, %v231
    %v254 = vpack.c.b16 %v234, %v233
    %v255 = vpack.c.b16 %v236, %v235
    %v256 = vpack.c.b16 %v238, %v237
    %v257 = vpack.c.b16 %v240, %v239
    %v258 = vpack.c.b16 %v242, %v241
    %275 = vmatprep.subr.bf16.mxu0 0
    %276 = vmatpush1.bf16.msra.mxu0 %v243
    %277 = vmatprep.subr.bf16.mxu0 0
    %278 = vmatpush1.bf16.msra.mxu0 %v244
    %279 = vmatprep.subr.bf16.mxu0 0
    %280 = vmatpush1.bf16.msra.mxu0 %v245
    %281 = vmatprep.subr.bf16.mxu0 0
    %282 = vmatpush1.bf16.msra.mxu0 %v246
    %283 = vmatprep.subr.bf16.mxu0 0
    %284 = vmatpush1.bf16.msra.mxu0 %v247
    %285 = vmatprep.subr.bf16.mxu0 0
    %286 = vmatpush1.bf16.msra.mxu0 %v248
    %287 = vmatprep.subr.bf16.mxu0 0
    %288 = vmatpush1.bf16.msra.mxu0 %v249
    %289 = vmatprep.subr.bf16.mxu0 0
    %290 = vmatpush1.bf16.msra.mxu0 %v250
    %291 = vmatprep.subr.bf16.mxu0 0
    %292 = vmatpush1.bf16.msra.mxu0 %v251
    %293 = vmatprep.subr.bf16.mxu0 0
    %294 = vmatpush1.bf16.msra.mxu0 %v252
    %295 = vmatprep.subr.bf16.mxu0 0
    %296 = vmatpush1.bf16.msra.mxu0 %v253
    %297 = vmatprep.subr.bf16.mxu0 0
    %298 = vmatpush1.bf16.msra.mxu0 %v254
    %299 = vmatprep.subr.bf16.mxu0 0
    %300 = vmatpush1.bf16.msra.mxu0 %v255
    %301 = vmatprep.subr.bf16.mxu0 0
    %302 = vmatpush1.bf16.msra.mxu0 %v256
    %303 = vmatprep.subr.bf16.mxu0 0
    %304 = vmatpush1.bf16.msra.mxu0 %v257
    %305 = vmatprep.subr.bf16.mxu0 0
    %306 = vmatpush1.bf16.msra.mxu0 %v258
    %307 = vmatprep.mubr.bf16.mxu0 %v139
    %308 = vmatmul.mubr.bf16.gmra.mrb[0].mxu0 %v138
    %v309 = vpop.f32.mrb[0].mxu0
    %v310 = vadd.f32 %v177, %v309
    %v311 = vpop.f32.mrb[0].mxu0
    %v312 = vpop.f32.mrb[0].mxu0
    %v313 = vpop.f32.mrb[0].mxu0
    %314 = vdwg.mxu0
    %315 = vst [vmem:[#allocation8] sm:$0xff] %v310
    // Predicated region
    $region34: #{tpu_custom_call.1} parent=1 // pred_check
      _
    $region35: #{tpu_custom_call.1} parent=1 // pred_check_branch
      %317 = sbr.rel (0) target = $region37
    $region36: #{tpu_custom_call.1} parent=1 // pred_region
      %s319 = ssub.s32 128, 128
      %320 = vsyncadd [#allocation4], %s319
      %s322 = sshll.u32 [#allocation8], 4
      %s323 = int_to_ptr.vmem [resolvable:$true] %s322
      %325 = dma.vmem_to_hbm [thread:$0]  %s323, 128, %s5, [#allocation4]
    $region37: #{tpu_custom_call.1} parent=1 // pred_fallthru
      _
    // Predicated region
    $region38: #{tpu_custom_call.1} parent=1 // pred_check
      _
    $region39: #{tpu_custom_call.1} parent=1 // pred_check_branch
      %327 = sbr.rel (0) target = $region41
    $region40: #{tpu_custom_call.1} parent=1 // pred_region
      %328 = dma.done [#allocation4], 128
    $region41: #{tpu_custom_call.1} parent=1 // pred_fallthru
      _
    %329 = vsyncpa [#allocation3], 1
    %330 = vsyncpa [#allocation6], 1
    %331 = vsyncpa [#allocation4], 1

</llo_original>
